<compile_context>
chip_gen: v7x
topology: tpu7x:2x2x1
jax: 0.10.0
libtpu: 0.0.40
codegen_flags: <defaults>
</compile_context>

<pallas_src>
import functools

import jax
import jax.numpy as jnp
from jax import lax
from jax.experimental import pallas as pl
from jax.experimental.pallas import tpu as pltpu


def autopad(k, p=None):
    if p is None:
        p = k // 2 if isinstance(k, int) else [x // 2 for x in k]
    return p


def _round_up(x, m):
    return (x + m - 1) // m * m


def _cdiv(a, b):
    return (a + b - 1) // b


# ---------------------------------------------------------------------------
# Pallas kernel: implicit-GEMM conv + folded BN + SiLU for one
# (batch, C2-tile, output-row-tile) grid step.
#   x_ref     : (1, Hy, Wy, Cin)   whole padded (space-to-depth'd) image
#   w_ref     : (Kq, Kq, Cin, TN)  BN-scaled weights for this C2 tile
#   shift_ref : (1, TN)            folded BatchNorm shift (f32)
#   o_ref     : (1, TOH, OW, TN)   output row tile
# ---------------------------------------------------------------------------
def _conv_bn_silu_kernel(x_ref, w_ref, shift_ref, o_ref, *, act):
    kq = w_ref.shape[0]
    _, toh, ow, tn = o_ref.shape
    row0 = pl.program_id(2) * toh          # first output row of this tile

    def row_body(t, carry):
        acc = jnp.zeros((ow, tn), jnp.float32)
        # Static tap loop: one (OW, Cin) x (Cin, TN) MXU dot per tap, f32 accumulate.
        for i in range(kq):
            for j in range(kq):
                lhs = x_ref[0, row0 + t + i, pl.ds(j, ow), :]        # (OW, Cin)
                acc = acc + jnp.dot(lhs, w_ref[i, j],
                                    preferred_element_type=jnp.float32)
        y = acc + shift_ref[...]                                     # + BN shift
        if act:                                                      # SiLU
            y = y * jax.nn.sigmoid(y)
        o_ref[0, t] = y.astype(o_ref.dtype)
        return carry

    lax.fori_loop(0, toh, row_body, 0)


# ---------------------------------------------------------------------------
# Channels-last core
# ---------------------------------------------------------------------------
def conv_bn_silu_nhwc(x, weight, bn_gamma, bn_beta, bn_mean, bn_var, *,
                      k, s, p, eps=1e-5, act=True, tn=128, toh=8,
                      mxu_dtype=jnp.bfloat16, out_dtype=None):
    """x: (N, H, W, C1); weight: (C2, C1, k, k) (PyTorch OIHW, groups=1, bias=False).
    Returns (N, OH, OW, C2).  Inference-mode BatchNorm folded into the weights;
    act=True -> SiLU, act=False -> identity."""
    # TODO(synk): grouped conv (g > 1) and arbitrary `act` modules are not implemented;
    # the Conv module defaults are g=1 and act=True (SiLU).
    n, h, w_in, c1 = x.shape
    c2 = weight.shape[0]

    oh = (h + 2 * p - k) // s + 1
    ow = (w_in + 2 * p - k) // s + 1
    kq = _cdiv(k, s)                        # taps per axis after space-to-depth
    cin = c1 * s * s if s > 1 else c1

    compute_dtype = jnp.dtype(mxu_dtype) if mxu_dtype is not None else x.dtype
    out_dtype = jnp.dtype(out_dtype) if out_dtype is not None else x.dtype

    # --- tile sizes ------------------------------------------------------------
    tn = max(128, _round_up(tn, 128))       # lane-dense output tiles (256 is also fine
                                            # on v6e/v7x when vreg pressure allows)
    c2p = _round_up(max(c2, tn), tn)
    toh = max(1, min(int(toh), oh))
    n_row_tiles = _cdiv(oh, toh)
    toh = _cdiv(oh, n_row_tiles)            # evenly sized row tiles
    oh_pad = toh * n_row_tiles

    # --- spatial padding for the stride-1-equivalent kernel input ---------------
    hy = oh_pad + kq - 1                    # rows of the (space-to-depth'd) kernel input
    wy = ow + kq - 1
    hp_need = hy * s
    wp_need = wy * s
    pad_bottom = hp_need - h - p
    pad_right = wp_need - w_in - p
    xp = jnp.pad(x, ((0, 0), (p, max(pad_bottom, 0)), (p, max(pad_right, 0)), (0, 0)))
    xp = xp[:, :hp_need, :wp_need, :]

    # --- stride-s conv -> stride-1 conv via space-to-depth ----------------------
    if s > 1:
        xp = xp.reshape(n, hy, s, wy, s, c1)
        xp = xp.transpose(0, 1, 3, 2, 4, 5).reshape(n, hy, wy, cin)

    # --- weights: OIHW -> (Kq, Kq, Cin, C2p), BN scale folded in -----------------
    scale = bn_gamma / jnp.sqrt(bn_var + eps)                  # (C2,)
    shift = bn_beta - bn_mean * scale                          # (C2,)
    w_hat = jnp.transpose(weight, (2, 3, 1, 0))                # (k, k, C1, C2)
    if s > 1:
        w_hat = jnp.pad(w_hat, ((0, kq * s - k), (0, kq * s - k), (0, 0), (0, 0)))
        w_hat = w_hat.reshape(kq, s, kq, s, c1, c2)
        w_hat = w_hat.transpose(0, 2, 1, 3, 4, 5).reshape(kq, kq, cin, c2)
    w_hat = w_hat * scale[None, None, None, :]
    w_hat = jnp.pad(w_hat, ((0, 0), (0, 0), (0, 0), (0, c2p - c2))).astype(compute_dtype)
    shift_p = jnp.pad(shift, (0, c2p - c2)).reshape(1, c2p).astype(jnp.float32)
    xq = xp.astype(compute_dtype)

    # --- VMEM budget: real double-buffered need, capped by the chip's capacity ---
    in_b = hy * wy * cin * jnp.dtype(compute_dtype).itemsize
    w_b = kq * kq * cin * tn * jnp.dtype(compute_dtype).itemsize
    o_b = toh * ow * tn * jnp.dtype(out_dtype).itemsize
    need = 2 * (in_b + w_b + o_b + tn * 4)
    cap = 64 * 1024 * 1024
    try:
        cap = int(getattr(pltpu.get_tpu_info(), "vmem_capacity_bytes", cap))
    except Exception:
        pass
    vmem_limit = int(min(max(need * 3 // 2 + (4 << 20), 16 << 20), cap * 3 // 4))

    grid = (n, c2p // tn, oh_pad // toh)

    out = pl.pallas_call(
        functools.partial(_conv_bn_silu_kernel, act=act),
        out_shape=jax.ShapeDtypeStruct((n, oh_pad, ow, c2p), out_dtype),
        grid_spec=pltpu.PrefetchScalarGridSpec(
            num_scalar_prefetch=0,
            grid=grid,
            in_specs=[
                # Whole padded image: block index depends only on the batch axis, so
                # it is fetched once per image and stays VMEM-resident across the
                # C2 / row-tile axes.
                pl.BlockSpec((1, hy, wy, cin), lambda b, j, r: (b, 0, 0, 0)),
                # Weights / shift: constant in the batch and row-tile axes.
                pl.BlockSpec((kq, kq, cin, tn), lambda b, j, r: (0, 0, 0, j)),
                pl.BlockSpec((1, tn), lambda b, j, r: (0, j)),
            ],
            out_specs=pl.BlockSpec((1, toh, ow, tn), lambda b, j, r: (b, r, 0, j)),
        ),
        compiler_params=pltpu.CompilerParams(
            dimension_semantics=("parallel", "parallel", "parallel"),
            vmem_limit_bytes=vmem_limit,
        ),
    )(xq, w_hat, shift_p)

    return out[:, :oh, :, :c2]


@functools.partial(jax.jit, static_argnames=("k", "s", "p", "act", "tn", "toh",
                                             "mxu_dtype", "out_dtype"))
def conv_bn_silu(x, weight, bn_gamma, bn_beta, bn_mean, bn_var, *,
                 k, s, p, eps=1e-5, act=True, tn=128, toh=8,
                 mxu_dtype=jnp.bfloat16, out_dtype=None):
    """PyTorch-layout entry point: x (N, C1, H, W) -> (N, C2, OH, OW).
    NHWC pipelines should call conv_bn_silu_nhwc directly and skip the two layout
    transposes below (pure HBM plumbing)."""
    x_nhwc = jnp.transpose(x, (0, 2, 3, 1))
    y = conv_bn_silu_nhwc(x_nhwc, weight, bn_gamma, bn_beta, bn_mean, bn_var,
                          k=k, s=s, p=p, eps=eps, act=act, tn=tn, toh=toh,
                          mxu_dtype=mxu_dtype, out_dtype=out_dtype)
    return jnp.transpose(y, (0, 3, 1, 2))


# ---------------------------------------------------------------------------
# Reference (pure JAX) for the correctness check
# ---------------------------------------------------------------------------
def _reference(x, weight, bn_gamma, bn_beta, bn_mean, bn_var, *, k, s, p,
               eps=1e-5, act=True):
    y = lax.conv_general_dilated(
        x, weight, window_strides=(s, s), padding=[(p, p), (p, p)],
        dimension_numbers=("NCHW", "OIHW", "NCHW"),
        precision=lax.Precision.HIGHEST)
    scale = bn_gamma / jnp.sqrt(bn_var + eps)
    shift = bn_beta - bn_mean * scale
    y = y * scale[None, :, None, None] + shift[None, :, None, None]
    if act:
        y = y * jax.nn.sigmoid(y)
    return y


if __name__ == "__main__":
    # (n, c1, c2, k, s, h, w, toh, act, mxu_dtype, tol)
    configs = [
        (2, 4, 8, 3, 1, 16, 16, 8, True, jnp.bfloat16, 3e-2),   # 3x3 s=1, 2 row tiles, bf16
        (1, 3, 16, 3, 2, 17, 17, 8, True, jnp.bfloat16, 3e-2),  # 3x3 s=2 -> space-to-depth, ragged
        (2, 8, 32, 1, 1, 8, 8, 4, True, jnp.bfloat16, 3e-2),    # 1x1 pointwise conv
        (2, 4, 8, 3, 1, 16, 16, 8, True, jnp.float32, 2e-3),    # f32 MXU path (tight check)
        (1, 4, 8, 3, 1, 16, 16, 8, False, jnp.bfloat16, 3e-2),  # act=False (identity)
    ]
    key = jax.random.PRNGKey(0)
    for (n, c1, c2, k, s, h, w, toh, act, mxu_dtype, tol) in configs:
        p = autopad(k)
        key, kx, kw_, kg, kb, km, kv = jax.random.split(key, 7)
        x = jax.random.normal(kx, (n, c1, h, w), dtype=jnp.float32)
        weight = jax.random.normal(kw_, (c2, c1, k, k), dtype=jnp.float32) * 0.1
        bn_gamma = 1.0 + 0.1 * jax.random.normal(kg, (c2,), dtype=jnp.float32)
        bn_beta = 0.1 * jax.random.normal(kb, (c2,), dtype=jnp.float32)
        bn_mean = 0.1 * jax.random.normal(km, (c2,), dtype=jnp.float32)
        bn_var = jnp.abs(jax.random.normal(kv, (c2,), dtype=jnp.float32)) + 0.5

        out = conv_bn_silu(x, weight, bn_gamma, bn_beta, bn_mean, bn_var,
                           k=k, s=s, p=p, act=act, toh=toh, mxu_dtype=mxu_dtype)
        out = jax.block_until_ready(out)

        ref = _reference(x, weight, bn_gamma, bn_beta, bn_mean, bn_var,
                         k=k, s=s, p=p, act=act)
        oh = (h + 2 * p - k) // s + 1
        ow = (w + 2 * p - k) // s + 1
        assert out.shape == (n, c2, oh, ow), (out.shape, (n, c2, oh, ow))
        err = float(jnp.max(jnp.abs(out - ref)))
        assert jnp.allclose(out, ref, atol=tol, rtol=tol), (
            f"mismatch vs reference conv for config "
            f"{(n, c1, c2, k, s, h, w, act, mxu_dtype)}: max abs err {err}")

    print("KERNEL_OK")
</pallas_src>

<mosaic_0001>
module attributes {stable_mosaic.version = 11 : i64} {
  func.func @_conv_bn_silu_kernel(%arg0: i32, %arg1: i32, %arg2: i32, %arg3: memref<1x18x18x4xbf16, #tpu.memory_space<vmem>>, %arg4: memref<3x3x4x128xbf16, #tpu.memory_space<vmem>>, %arg5: memref<1x128xf32, #tpu.memory_space<vmem>>, %arg6: memref<1x8x16x128xf32, #tpu.memory_space<vmem>>) attributes {dimension_semantics = [#tpu.dimension_semantics<parallel>, #tpu.dimension_semantics<parallel>, #tpu.dimension_semantics<parallel>], iteration_bounds = array<i64: 2, 1, 2>, scalar_prefetch = 0 : i64, scratch_operands = 0 : i64, tpu.core_type = #tpu.core_type<tc>, window_params = [{transform_indices = @transform_0, window_bounds = array<i64: 1, 18, 18, 4>}, {transform_indices = @transform_1, window_bounds = array<i64: 3, 3, 4, 128>}, {transform_indices = @transform_2, window_bounds = array<i64: 1, 128>}, {transform_indices = @transform_3, window_bounds = array<i64: 1, 8, 16, 128>}]} {
    %c8_i32 = arith.constant 8 : i32
    %0 = arith.muli %arg2, %c8_i32 : i32
    %c0_i32 = arith.constant 0 : i32
    %c8_i32_0 = arith.constant 8 : i32
    %1 = arith.addi %c0_i32, %c8_i32_0 : i32
    %c1_i32 = arith.constant 1 : i32
    scf.for %arg7 = %c0_i32 to %1 step %c1_i32  : i32 {
      %cst = arith.constant 0.000000e+00 : f32
      %2 = vector.broadcast %cst : f32 to vector<16x128xf32>
      %3 = arith.addi %0, %arg7 : i32
      %c0_i32_2 = arith.constant 0 : i32
      %4 = arith.addi %3, %c0_i32_2 : i32
      %c0 = arith.constant 0 : index
      %5 = arith.index_cast %4 : i32 to index
      %c0_3 = arith.constant 0 : index
      %c0_4 = arith.constant 0 : index
      %6 = vector.load %arg3[%c0, %5, %c0_3, %c0_4] : memref<1x18x18x4xbf16, #tpu.memory_space<vmem>>, vector<1x1x16x4xbf16>
      %7 = vector.shape_cast %6 : vector<1x1x16x4xbf16> to vector<16x4xbf16>
      %c0_5 = arith.constant 0 : index
      %c0_6 = arith.constant 0 : index
      %c0_7 = arith.constant 0 : index
      %c0_8 = arith.constant 0 : index
      %8 = vector.load %arg4[%c0_5, %c0_6, %c0_7, %c0_8] : memref<3x3x4x128xbf16, #tpu.memory_space<vmem>>, vector<1x1x4x128xbf16>
      %9 = vector.shape_cast %8 : vector<1x1x4x128xbf16> to vector<4x128xbf16>
      %cst_9 = arith.constant dense<0.000000e+00> : vector<16x128xf32>
      %10 = tpu.matmul %7, %9, %cst_9 {dimension_numbers = #tpu.dot_dimension_numbers<[1], [0], [0], [1], [0, 0, 1, 1], [], []>} : vector<16x4xbf16>, vector<4x128xbf16>, vector<16x128xf32> -> vector<16x128xf32>
      %11 = arith.addf %2, %10 : vector<16x128xf32>
      %12 = arith.addi %0, %arg7 : i32
      %c0_i32_10 = arith.constant 0 : i32
      %13 = arith.addi %12, %c0_i32_10 : i32
      %c0_11 = arith.constant 0 : index
      %14 = arith.index_cast %13 : i32 to index
      %c1 = arith.constant 1 : index
      %c0_12 = arith.constant 0 : index
      %15 = vector.load %arg3[%c0_11, %14, %c1, %c0_12] : memref<1x18x18x4xbf16, #tpu.memory_space<vmem>>, vector<1x1x16x4xbf16>
      %16 = vector.shape_cast %15 : vector<1x1x16x4xbf16> to vector<16x4xbf16>
      %c0_13 = arith.constant 0 : index
      %c1_14 = arith.constant 1 : index
      %c0_15 = arith.constant 0 : index
      %c0_16 = arith.constant 0 : index
      %17 = vector.load %arg4[%c0_13, %c1_14, %c0_15, %c0_16] : memref<3x3x4x128xbf16, #tpu.memory_space<vmem>>, vector<1x1x4x128xbf16>
      %18 = vector.shape_cast %17 : vector<1x1x4x128xbf16> to vector<4x128xbf16>
      %cst_17 = arith.constant dense<0.000000e+00> : vector<16x128xf32>
      %19 = tpu.matmul %16, %18, %cst_17 {dimension_numbers = #tpu.dot_dimension_numbers<[1], [0], [0], [1], [0, 0, 1, 1], [], []>} : vector<16x4xbf16>, vector<4x128xbf16>, vector<16x128xf32> -> vector<16x128xf32>
      %20 = arith.addf %11, %19 : vector<16x128xf32>
      %21 = arith.addi %0, %arg7 : i32
      %c0_i32_18 = arith.constant 0 : i32
      %22 = arith.addi %21, %c0_i32_18 : i32
      %c0_19 = arith.constant 0 : index
      %23 = arith.index_cast %22 : i32 to index
      %c2 = arith.constant 2 : index
      %c0_20 = arith.constant 0 : index
      %24 = vector.load %arg3[%c0_19, %23, %c2, %c0_20] : memref<1x18x18x4xbf16, #tpu.memory_space<vmem>>, vector<1x1x16x4xbf16>
      %25 = vector.shape_cast %24 : vector<1x1x16x4xbf16> to vector<16x4xbf16>
      %c0_21 = arith.constant 0 : index
      %c2_22 = arith.constant 2 : index
      %c0_23 = arith.constant 0 : index
      %c0_24 = arith.constant 0 : index
      %26 = vector.load %arg4[%c0_21, %c2_22, %c0_23, %c0_24] : memref<3x3x4x128xbf16, #tpu.memory_space<vmem>>, vector<1x1x4x128xbf16>
      %27 = vector.shape_cast %26 : vector<1x1x4x128xbf16> to vector<4x128xbf16>
      %cst_25 = arith.constant dense<0.000000e+00> : vector<16x128xf32>
      %28 = tpu.matmul %25, %27, %cst_25 {dimension_numbers = #tpu.dot_dimension_numbers<[1], [0], [0], [1], [0, 0, 1, 1], [], []>} : vector<16x4xbf16>, vector<4x128xbf16>, vector<16x128xf32> -> vector<16x128xf32>
      %29 = arith.addf %20, %28 : vector<16x128xf32>
      %30 = arith.addi %0, %arg7 : i32
      %c1_i32_26 = arith.constant 1 : i32
      %31 = arith.addi %30, %c1_i32_26 : i32
      %c0_27 = arith.constant 0 : index
      %32 = arith.index_cast %31 : i32 to index
      %c0_28 = arith.constant 0 : index
      %c0_29 = arith.constant 0 : index
      %33 = vector.load %arg3[%c0_27, %32, %c0_28, %c0_29] : memref<1x18x18x4xbf16, #tpu.memory_space<vmem>>, vector<1x1x16x4xbf16>
      %34 = vector.shape_cast %33 : vector<1x1x16x4xbf16> to vector<16x4xbf16>
      %c1_30 = arith.constant 1 : index
      %c0_31 = arith.constant 0 : index
      %c0_32 = arith.constant 0 : index
      %c0_33 = arith.constant 0 : index
      %35 = vector.load %arg4[%c1_30, %c0_31, %c0_32, %c0_33] : memref<3x3x4x128xbf16, #tpu.memory_space<vmem>>, vector<1x1x4x128xbf16>
      %36 = vector.shape_cast %35 : vector<1x1x4x128xbf16> to vector<4x128xbf16>
      %cst_34 = arith.constant dense<0.000000e+00> : vector<16x128xf32>
      %37 = tpu.matmul %34, %36, %cst_34 {dimension_numbers = #tpu.dot_dimension_numbers<[1], [0], [0], [1], [0, 0, 1, 1], [], []>} : vector<16x4xbf16>, vector<4x128xbf16>, vector<16x128xf32> -> vector<16x128xf32>
      %38 = arith.addf %29, %37 : vector<16x128xf32>
      %39 = arith.addi %0, %arg7 : i32
      %c1_i32_35 = arith.constant 1 : i32
      %40 = arith.addi %39, %c1_i32_35 : i32
      %c0_36 = arith.constant 0 : index
      %41 = arith.index_cast %40 : i32 to index
      %c1_37 = arith.constant 1 : index
      %c0_38 = arith.constant 0 : index
      %42 = vector.load %arg3[%c0_36, %41, %c1_37, %c0_38] : memref<1x18x18x4xbf16, #tpu.memory_space<vmem>>, vector<1x1x16x4xbf16>
      %43 = vector.shape_cast %42 : vector<1x1x16x4xbf16> to vector<16x4xbf16>
      %c1_39 = arith.constant 1 : index
      %c1_40 = arith.constant 1 : index
      %c0_41 = arith.constant 0 : index
      %c0_42 = arith.constant 0 : index
      %44 = vector.load %arg4[%c1_39, %c1_40, %c0_41, %c0_42] : memref<3x3x4x128xbf16, #tpu.memory_space<vmem>>, vector<1x1x4x128xbf16>
      %45 = vector.shape_cast %44 : vector<1x1x4x128xbf16> to vector<4x128xbf16>
      %cst_43 = arith.constant dense<0.000000e+00> : vector<16x128xf32>
      %46 = tpu.matmul %43, %45, %cst_43 {dimension_numbers = #tpu.dot_dimension_numbers<[1], [0], [0], [1], [0, 0, 1, 1], [], []>} : vector<16x4xbf16>, vector<4x128xbf16>, vector<16x128xf32> -> vector<16x128xf32>
      %47 = arith.addf %38, %46 : vector<16x128xf32>
      %48 = arith.addi %0, %arg7 : i32
      %c1_i32_44 = arith.constant 1 : i32
      %49 = arith.addi %48, %c1_i32_44 : i32
      %c0_45 = arith.constant 0 : index
      %50 = arith.index_cast %49 : i32 to index
      %c2_46 = arith.constant 2 : index
      %c0_47 = arith.constant 0 : index
      %51 = vector.load %arg3[%c0_45, %50, %c2_46, %c0_47] : memref<1x18x18x4xbf16, #tpu.memory_space<vmem>>, vector<1x1x16x4xbf16>
      %52 = vector.shape_cast %51 : vector<1x1x16x4xbf16> to vector<16x4xbf16>
      %c1_48 = arith.constant 1 : index
      %c2_49 = arith.constant 2 : index
      %c0_50 = arith.constant 0 : index
      %c0_51 = arith.constant 0 : index
      %53 = vector.load %arg4[%c1_48, %c2_49, %c0_50, %c0_51] : memref<3x3x4x128xbf16, #tpu.memory_space<vmem>>, vector<1x1x4x128xbf16>
      %54 = vector.shape_cast %53 : vector<1x1x4x128xbf16> to vector<4x128xbf16>
      %cst_52 = arith.constant dense<0.000000e+00> : vector<16x128xf32>
      %55 = tpu.matmul %52, %54, %cst_52 {dimension_numbers = #tpu.dot_dimension_numbers<[1], [0], [0], [1], [0, 0, 1, 1], [], []>} : vector<16x4xbf16>, vector<4x128xbf16>, vector<16x128xf32> -> vector<16x128xf32>
      %56 = arith.addf %47, %55 : vector<16x128xf32>
      %57 = arith.addi %0, %arg7 : i32
      %c2_i32 = arith.constant 2 : i32
      %58 = arith.addi %57, %c2_i32 : i32
      %c0_53 = arith.constant 0 : index
      %59 = arith.index_cast %58 : i32 to index
      %c0_54 = arith.constant 0 : index
      %c0_55 = arith.constant 0 : index
      %60 = vector.load %arg3[%c0_53, %59, %c0_54, %c0_55] : memref<1x18x18x4xbf16, #tpu.memory_space<vmem>>, vector<1x1x16x4xbf16>
      %61 = vector.shape_cast %60 : vector<1x1x16x4xbf16> to vector<16x4xbf16>
      %c2_56 = arith.constant 2 : index
      %c0_57 = arith.constant 0 : index
      %c0_58 = arith.constant 0 : index
      %c0_59 = arith.constant 0 : index
      %62 = vector.load %arg4[%c2_56, %c0_57, %c0_58, %c0_59] : memref<3x3x4x128xbf16, #tpu.memory_space<vmem>>, vector<1x1x4x128xbf16>
      %63 = vector.shape_cast %62 : vector<1x1x4x128xbf16> to vector<4x128xbf16>
      %cst_60 = arith.constant dense<0.000000e+00> : vector<16x128xf32>
      %64 = tpu.matmul %61, %63, %cst_60 {dimension_numbers = #tpu.dot_dimension_numbers<[1], [0], [0], [1], [0, 0, 1, 1], [], []>} : vector<16x4xbf16>, vector<4x128xbf16>, vector<16x128xf32> -> vector<16x128xf32>
      %65 = arith.addf %56, %64 : vector<16x128xf32>
      %66 = arith.addi %0, %arg7 : i32
      %c2_i32_61 = arith.constant 2 : i32
      %67 = arith.addi %66, %c2_i32_61 : i32
      %c0_62 = arith.constant 0 : index
      %68 = arith.index_cast %67 : i32 to index
      %c1_63 = arith.constant 1 : index
      %c0_64 = arith.constant 0 : index
      %69 = vector.load %arg3[%c0_62, %68, %c1_63, %c0_64] : memref<1x18x18x4xbf16, #tpu.memory_space<vmem>>, vector<1x1x16x4xbf16>
      %70 = vector.shape_cast %69 : vector<1x1x16x4xbf16> to vector<16x4xbf16>
      %c2_65 = arith.constant 2 : index
      %c1_66 = arith.constant 1 : index
      %c0_67 = arith.constant 0 : index
      %c0_68 = arith.constant 0 : index
      %71 = vector.load %arg4[%c2_65, %c1_66, %c0_67, %c0_68] : memref<3x3x4x128xbf16, #tpu.memory_space<vmem>>, vector<1x1x4x128xbf16>
      %72 = vector.shape_cast %71 : vector<1x1x4x128xbf16> to vector<4x128xbf16>
      %cst_69 = arith.constant dense<0.000000e+00> : vector<16x128xf32>
      %73 = tpu.matmul %70, %72, %cst_69 {dimension_numbers = #tpu.dot_dimension_numbers<[1], [0], [0], [1], [0, 0, 1, 1], [], []>} : vector<16x4xbf16>, vector<4x128xbf16>, vector<16x128xf32> -> vector<16x128xf32>
      %74 = arith.addf %65, %73 : vector<16x128xf32>
      %75 = arith.addi %0, %arg7 : i32
      %c2_i32_70 = arith.constant 2 : i32
      %76 = arith.addi %75, %c2_i32_70 : i32
      %c0_71 = arith.constant 0 : index
      %77 = arith.index_cast %76 : i32 to index
      %c2_72 = arith.constant 2 : index
      %c0_73 = arith.constant 0 : index
      %78 = vector.load %arg3[%c0_71, %77, %c2_72, %c0_73] : memref<1x18x18x4xbf16, #tpu.memory_space<vmem>>, vector<1x1x16x4xbf16>
      %79 = vector.shape_cast %78 : vector<1x1x16x4xbf16> to vector<16x4xbf16>
      %c2_74 = arith.constant 2 : index
      %c2_75 = arith.constant 2 : index
      %c0_76 = arith.constant 0 : index
      %c0_77 = arith.constant 0 : index
      %80 = vector.load %arg4[%c2_74, %c2_75, %c0_76, %c0_77] : memref<3x3x4x128xbf16, #tpu.memory_space<vmem>>, vector<1x1x4x128xbf16>
      %81 = vector.shape_cast %80 : vector<1x1x4x128xbf16> to vector<4x128xbf16>
      %cst_78 = arith.constant dense<0.000000e+00> : vector<16x128xf32>
      %82 = tpu.matmul %79, %81, %cst_78 {dimension_numbers = #tpu.dot_dimension_numbers<[1], [0], [0], [1], [0, 0, 1, 1], [], []>} : vector<16x4xbf16>, vector<4x128xbf16>, vector<16x128xf32> -> vector<16x128xf32>
      %83 = arith.addf %74, %82 : vector<16x128xf32>
      %c0_79 = arith.constant 0 : index
      %c0_80 = arith.constant 0 : index
      %84 = vector.load %arg5[%c0_79, %c0_80] : memref<1x128xf32, #tpu.memory_space<vmem>>, vector<1x128xf32>
      %85 = vector.broadcast %84 : vector<1x128xf32> to vector<16x128xf32>
      %86 = arith.addf %83, %85 : vector<16x128xf32>
      %87 = arith.negf %86 : vector<16x128xf32>
      %88 = math.exp %87 : vector<16x128xf32>
      %cst_81 = arith.constant 1.000000e+00 : f32
      %89 = vector.broadcast %cst_81 : f32 to vector<16x128xf32>
      %90 = arith.addf %89, %88 : vector<16x128xf32>
      %91 = arith.divf %89, %90 : vector<16x128xf32>
      %92 = arith.mulf %86, %91 : vector<16x128xf32>
      %c0_82 = arith.constant 0 : index
      %93 = arith.index_cast %arg7 : i32 to index
      %c0_83 = arith.constant 0 : index
      %c0_84 = arith.constant 0 : index
      %94 = vector.load %arg6[%c0_82, %93, %c0_83, %c0_84] : memref<1x8x16x128xf32, #tpu.memory_space<vmem>>, vector<1x1x16x128xf32>
      %95 = vector.shape_cast %94 : vector<1x1x16x128xf32> to vector<16x128xf32>
      %96 = vector.shape_cast %92 : vector<16x128xf32> to vector<1x1x16x128xf32>
      tpu.vector_store %arg6[%c0_82, %93, %c0_83, %c0_84], %96 {strides = array<i32>} : memref<1x8x16x128xf32, #tpu.memory_space<vmem>>, vector<1x1x16x128xf32>,
    }
    %c8_i32_1 = arith.constant 8 : i32
    return
  }
  func.func @transform_0(%arg0: i32, %arg1: i32, %arg2: i32) -> (i32, i32, i32, i32) {
    %c0_i32 = arith.constant 0 : i32
    %c0_i32_0 = arith.constant 0 : i32
    %c0_i32_1 = arith.constant 0 : i32
    %c0_i32_2 = arith.constant 0 : i32
    return %arg0, %c0_i32, %c0_i32_0, %c0_i32_1 : i32, i32, i32, i32
  }
  func.func @transform_1(%arg0: i32, %arg1: i32, %arg2: i32) -> (i32, i32, i32, i32) {
    %c0_i32 = arith.constant 0 : i32
    %c0_i32_0 = arith.constant 0 : i32
    %c0_i32_1 = arith.constant 0 : i32
    %c0_i32_2 = arith.constant 0 : i32
    return %c0_i32, %c0_i32_0, %c0_i32_1, %arg1 : i32, i32, i32, i32
  }
  func.func @transform_2(%arg0: i32, %arg1: i32, %arg2: i32) -> (i32, i32) {
    %c0_i32 = arith.constant 0 : i32
    %c0_i32_0 = arith.constant 0 : i32
    return %c0_i32, %arg1 : i32, i32
  }
  func.func @transform_3(%arg0: i32, %arg1: i32, %arg2: i32) -> (i32, i32, i32, i32) {
    %c0_i32 = arith.constant 0 : i32
    %c0_i32_0 = arith.constant 0 : i32
    return %arg0, %arg2, %c0_i32, %arg1 : i32, i32, i32, i32
  }
}

</mosaic_0001>

<llo_original>
// kernel: conv_bn_silu.1
$region0: #{conv_bn_silu.1}
  #allocation0 [shape = 'u32[]', space=smem, size = 0x4, offset = 0x4, fixed_abs, tag = 'smem constant byte address 0x4 - core index']
  #allocation1 [shape = 'u32[144,128]{1,0:T(1,128)}', space=vmem, size = 0x12000, scoped, tag = 'internal scratch']
  %s0 = inlined_call_operand.vmem [shape: bf16[2,18,18,4], index: 0, kind: input, shape index: {}]
  %s1 = inlined_call_operand.vmem [shape: bf16[3,3,4,128], index: 1, kind: input, shape index: {}]
  %s2 = inlined_call_operand.vmem [shape: f32[1,128], index: 2, kind: input, shape index: {}]
  %s3 = inlined_call_operand.vmem [shape: f32[2,16,16,128], index: 3, kind: output, shape index: {}]
  %s4 = sld [smem:[#allocation0]]
  $region52: #{conv_bn_silu.1} parent=0
    _
  %s6 = ssub.s32 1, %s4
  %s7 = scalar_select 0, %s6, %s4
  loop: start=0, step=1, limit=6
  $region2: #{conv_bn_silu.1} parent=0 // loop_pre_header
    _
  $region3: #{conv_bn_silu.1} parent=0 // loop_header
    %s9 = sphi 0, %s13
    %p10 = scmp.ge.s32.totalorder %s9, 6
    %s16 = sphi 0, %s35
    %s17 = sphi 0, %s31
    %s18 = sphi 0, %s27
    %s19 = sphi 0, %s16
    %s20 = sphi 0, %s17
    %s21 = sphi 0, %s18
    %s22 = sphi 0, %s19
    %s23 = sphi 0, %s20
    %s24 = sphi 0, %s21
    %s38 = sphi 0, %s40
    %s41 = sphi 0, %s38
    %s42 = sphi 0, %s41
    %s58 = sphi 0, %s42
    %s64 = sphi 0, %s66
    %s67 = sphi 0, %s64
    %s68 = sphi 0, %s67
    %s84 = sphi 0, %s68
    %s90 = sphi 0, %s92
    %s93 = sphi 0, %s90
    %s94 = sphi 0, %s93
    %s110 = sphi 0, %s94
    %s120 = sphi 0, %s122
    %s123 = sphi 0, %s120
    %s124 = sphi 0, %s123
    %s140 = sphi 0, %s124
  $region4: #{conv_bn_silu.1} parent=0 // loop_header_branch
    %12 = sbr.rel (%p10) target = $region8
  $region5: #{conv_bn_silu.1} parent=0 // loop_body
    %s14 = ssub.s32 %s9, 1
    %s15 = ssub.s32 %s9, 2
    %s25 = sadd.s32 1, %s18
    %p26 = scmp.ge.s32.totalorder %s25, 2
    %s27 = scalar_select %p26, 0, %s25
    %s28 = sadd.s32 1, %s17
    %s29 = scalar_select %p26, %s28, %s17
    %p30 = scmp.ge.s32.totalorder %s29, 1
    %s31 = scalar_select %p30, 0, %s29
    %s32 = sadd.s32 1, %s16
    %s33 = scalar_select %p30, %s32, %s16
    %p34 = scmp.ge.s32.totalorder %s33, 2
    %s35 = scalar_select %p34, 0, %s33
    %s36 = ssub.s32 %s16, %s35
    %p37 = scmp.eq.s32.totalorder %s36, 0
    %s39 = sadd.s32 %s38, 1
    %s40 = scalar_select %p37, %s38, %s39
    %p43 = pneg %p37
    %p44 = scmp.eq.s32.totalorder %s9, 3
    %p45 = por %p43, %p44
    %p46 = scmp.ne.s32.totalorder %s38, %s41
    %p47 = scmp.eq.s32.totalorder %s9, 0
    %p48 = por %p46, %p47
    %p49 = scmp.ne.s32.totalorder %s38, %s41
    %p50 = scmp.eq.s32.totalorder %s14, 3
    %p51 = por %p49, %p50
    %p52 = scmp.ne.s32.totalorder %s41, %s42
    %p53 = scmp.eq.s32.totalorder %s14, 0
    %p54 = por %p52, %p53
    %p55 = scmp.ne.s32.totalorder %s41, %s42
    %p56 = scmp.eq.s32.totalorder %s15, 3
    %p57 = por %p55, %p56
    %p59 = scmp.ne.s32.totalorder %s42, %s58
    %p60 = scmp.eq.s32.totalorder %s15, 0
    %p61 = por %p59, %p60
    %s62 = ssub.s32 %s17, %s31
    %p63 = scmp.eq.s32.totalorder %s62, 0
    %s65 = sadd.s32 %s64, 1
    %s66 = scalar_select %p63, %s64, %s65
    %p69 = pneg %p63
    %p70 = scmp.eq.s32.totalorder %s9, 3
    %p71 = por %p69, %p70
    %p72 = scmp.ne.s32.totalorder %s64, %s67
    %p73 = scmp.eq.s32.totalorder %s9, 0
    %p74 = por %p72, %p73
    %p75 = scmp.ne.s32.totalorder %s64, %s67
    %p76 = scmp.eq.s32.totalorder %s14, 3
    %p77 = por %p75, %p76
    %p78 = scmp.ne.s32.totalorder %s67, %s68
    %p79 = scmp.eq.s32.totalorder %s14, 0
    %p80 = por %p78, %p79
    %p81 = scmp.ne.s32.totalorder %s67, %s68
    %p82 = scmp.eq.s32.totalorder %s15, 3
    %p83 = por %p81, %p82
    %p85 = scmp.ne.s32.totalorder %s68, %s84
    %p86 = scmp.eq.s32.totalorder %s15, 0
    %p87 = por %p85, %p86
    %s88 = ssub.s32 %s17, %s31
    %p89 = scmp.eq.s32.totalorder %s88, 0
    %s91 = sadd.s32 %s90, 1
    %s92 = scalar_select %p89, %s90, %s91
    %p95 = pneg %p89
    %p96 = scmp.eq.s32.totalorder %s9, 3
    %p97 = por %p95, %p96
    %p98 = scmp.ne.s32.totalorder %s90, %s93
    %p99 = scmp.eq.s32.totalorder %s9, 0
    %p100 = por %p98, %p99
    %p101 = scmp.ne.s32.totalorder %s90, %s93
    %p102 = scmp.eq.s32.totalorder %s14, 3
    %p103 = por %p101, %p102
    %p104 = scmp.ne.s32.totalorder %s93, %s94
    %p105 = scmp.eq.s32.totalorder %s14, 0
    %p106 = por %p104, %p105
    %p107 = scmp.ne.s32.totalorder %s93, %s94
    %p108 = scmp.eq.s32.totalorder %s15, 3
    %p109 = por %p107, %p108
    %p111 = scmp.ne.s32.totalorder %s94, %s110
    %p112 = scmp.eq.s32.totalorder %s15, 0
    %p113 = por %p111, %p112
    %s114 = ssub.s32 %s16, %s35
    %s115 = ssub.s32 %s18, %s27
    %s116 = sor.u32 %s114, %s115
    %s117 = ssub.s32 %s17, %s31
    %s118 = sor.u32 %s116, %s117
    %p119 = scmp.eq.s32.totalorder %s118, 0
    %s121 = sadd.s32 %s120, 1
    %s122 = scalar_select %p119, %s120, %s121
    %p125 = pneg %p119
    %p126 = scmp.eq.s32.totalorder %s9, 3
    %p127 = por %p125, %p126
    %p128 = scmp.ne.s32.totalorder %s120, %s123
    %p129 = scmp.eq.s32.totalorder %s9, 0
    %p130 = por %p128, %p129
    %p131 = scmp.ne.s32.totalorder %s120, %s123
    %p132 = scmp.eq.s32.totalorder %s14, 3
    %p133 = por %p131, %p132
    %p134 = scmp.ne.s32.totalorder %s123, %s124
    %p135 = scmp.eq.s32.totalorder %s14, 0
    %p136 = por %p134, %p135
    %p137 = scmp.ne.s32.totalorder %s123, %s124
    %p138 = scmp.eq.s32.totalorder %s15, 3
    %p139 = por %p137, %p138
    %p141 = scmp.ne.s32.totalorder %s124, %s140
    %p142 = scmp.eq.s32.totalorder %s15, 0
    %p143 = por %p141, %p142
    %p144 = scmp.le.s32.totalorder 1, %s9
    %p145 = scmp.lt.s32.totalorder %s9, 5
    %p146 = pnand %p144, %p145
    %p147 = pneg %p146
    // Predicated region
    $region9: #{conv_bn_silu.1} parent=5 // pred_check
      _
    $region10: #{conv_bn_silu.1} parent=5 // pred_check_branch
      %149 = sbr.rel (%p146) target = $region12
    $region11: #{conv_bn_silu.1} parent=5 // pred_region
      %s150 = ssub.s32 %s9, 1
      // Predicated region
      $region13: #{conv_bn_silu.1} parent=11 // pred_check
        %p151 = pneg %p80
      $region14: #{conv_bn_silu.1} parent=11 // pred_check_branch
        %153 = sbr.rel (%p151) target = $region16
      $region15: #{conv_bn_silu.1} parent=11 // pred_region
        %p154 = scmp.lt.s32.totalorder %s20, 0
        %s155 = scalar_select %p154, %s20, 0
        %s156 = smul.addr %s155, 2
        %s157 = scalar_lea.vmem %s1, %s156
      $region16: #{conv_bn_silu.1} parent=11 // pred_fallthru
        _
      // Predicated region
      $region17: #{conv_bn_silu.1} parent=11 // pred_check
        %p158 = pneg %p106
      $region18: #{conv_bn_silu.1} parent=11 // pred_check_branch
        %160 = sbr.rel (%p158) target = $region20
      $region19: #{conv_bn_silu.1} parent=11 // pred_region
        %p161 = scmp.lt.s32.totalorder %s20, 0
        %s162 = scalar_select %p161, %s20, 0
        %s163 = scalar_lea.vmem %s2, %s162
      $region20: #{conv_bn_silu.1} parent=11 // pred_fallthru
        _
    $region12: #{conv_bn_silu.1} parent=5 // pred_fallthru
      _
    %p164 = scmp.lt.s32.totalorder %s9, 4
    // Predicated region
    $region21: #{conv_bn_silu.1} parent=5 // pred_check
      %p165 = pneg %p164
    $region22: #{conv_bn_silu.1} parent=5 // pred_check_branch
      %167 = sbr.rel (%p165) target = $region24
    $region23: #{conv_bn_silu.1} parent=5 // pred_region
      // Predicated region
      $region25: #{conv_bn_silu.1} parent=23 // pred_check
        %p168 = pneg %p48
      $region26: #{conv_bn_silu.1} parent=23 // pred_check_branch
        %170 = sbr.rel (%p168) target = $region28
      $region27: #{conv_bn_silu.1} parent=23 // pred_region
        %p171 = scmp.lt.s32.totalorder %s16, 1
        %s172 = scalar_select %p171, %s16, 1
        %s173 = smul.addr %s172, 54
        %s174 = smul.addr %s173, 4
        %s175 = scalar_lea.vmem %s0, %s174
      $region28: #{conv_bn_silu.1} parent=23 // pred_fallthru
        _
    $region24: #{conv_bn_silu.1} parent=5 // pred_fallthru
      _
    %p176 = scmp.le.s32.totalorder 1, %s9
    %p177 = scmp.lt.s32.totalorder %s9, 5
    %p178 = pnand %p176, %p177
    %p179 = pneg %p178
    // Predicated region
    $region29: #{conv_bn_silu.1} parent=5 // pred_check
      _
    $region30: #{conv_bn_silu.1} parent=5 // pred_check_branch
      %181 = sbr.rel (%p178) target = $region32
    $region31: #{conv_bn_silu.1} parent=5 // pred_region
      %s182 = ssub.s32 %s9, 1
      %p183 = scmp.lt.s32.totalorder %s19, 1
      %s184 = scalar_select %p183, %s19, 1
      %s185 = smul.addr %s184, 54
      %s186 = smul.addr %s185, 4
      %s187 = scalar_lea.vmem %s0, %s186
      %p188 = pneg %p54
      %p189 = pneg %p51
      %p190 = scmp.lt.s32.totalorder %s20, 0
      %s191 = scalar_select %p190, %s20, 0
      %s192 = smul.addr %s191, 2
      %s193 = scalar_lea.vmem %s1, %s192
      %p194 = pneg %p80
      %p195 = pneg %p77
      %p196 = scmp.lt.s32.totalorder %s20, 0
      %s197 = scalar_select %p196, %s20, 0
      %s198 = scalar_lea.vmem %s2, %s197
      %p199 = pneg %p106
      %p200 = pneg %p103
      %p201 = pneg %p136
      %p202 = pneg %p133
      %s203 = smul.u32 8, %s21
      %p204 = scmp.lt.s32.totalorder %s19, 1
      %s205 = scalar_select %p204, %s19, 1
      %p206 = scmp.lt.s32.totalorder %s203, 15
      %s207 = scalar_select %p206, %s203, 15
      %p208 = scmp.lt.s32.totalorder %s20, 0
      %s209 = scalar_select %p208, %s20, 0
      %s210 = smul.addr %s207, 2
      %s211 = sadd.s32 %s209, %s210
      %s212 = smul.addr %s205, 32
      %s213 = sadd.s32 %s211, %s212
      %s214 = smul.addr %s213, 8
      %s215 = scalar_lea.vmem %s3, %s214
      %p216 = scmp.lt.s32.totalorder %s19, 1
      %s217 = scalar_select %p216, %s19, 1
      %s218 = smul.addr %s217, 54
      %s219 = smul.addr %s218, 4
      %s220 = scalar_lea.vmem %s0, %s219
      %p221 = scmp.lt.s32.totalorder %s20, 0
      %s222 = scalar_select %p221, %s20, 0
      %s223 = smul.addr %s222, 2
      %s224 = scalar_lea.vmem %s1, %s223
      %p225 = scmp.lt.s32.totalorder %s20, 0
      %s226 = scalar_select %p225, %s20, 0
      %s227 = scalar_lea.vmem %s2, %s226
      %s228 = smul.u32 8, %s21
      %p229 = scmp.lt.s32.totalorder %s19, 1
      %s230 = scalar_select %p229, %s19, 1
      %p231 = scmp.lt.s32.totalorder %s228, 15
      %s232 = scalar_select %p231, %s228, 15
      %p233 = scmp.lt.s32.totalorder %s20, 0
      %s234 = scalar_select %p233, %s20, 0
      %s235 = smul.addr %s232, 2
      %s236 = sadd.s32 %s234, %s235
      %s237 = smul.addr %s230, 32
      %s238 = sadd.s32 %s236, %s237
      %s239 = smul.addr %s238, 8
      %s240 = scalar_lea.vmem %s3, %s239
      %s241 = smul.u32 8, %s21
      %s243 = smul.u32 %s21, 8
      loop: start=0, step=1, limit=8
      $region33: #{conv_bn_silu.1} parent=31 // loop_pre_header
        _
      $region34: #{conv_bn_silu.1} parent=31 // loop_header
        %s245 = sphi 0, %s249
        %p246 = scmp.ge.s32.totalorder %s245, 8
      $region35: #{conv_bn_silu.1} parent=31 // loop_header_branch
        %248 = sbr.rel (%p246) target = $region39
      $region36: #{conv_bn_silu.1} parent=31 // loop_body
        %s250 = sadd.s32 %s243, %s245
        %s251 = smul.u32 %s250, 3
        %s252 = smul.addr %s251, 4
        %s253 = scalar_lea.vmem %s220, %s252
        %v254 = vld [vmem:[%s253] sm:$0xf]
        %v255 = vld [vmem:[%s253 + $0x4] sm:$0xf]
        %v256 = vld [vmem:[%s224] sm:$0x3]
        %v257 = vld [vmem:[%s253 + $0x8] sm:$0x1]
        %s258 = scalar_lea.vmem %s224, 2
        %v259 = vld [vmem:[%s258] sm:$0x3]
        %v263 = vunpack.c.l.b16 %v254
        %v264 = vunpack.c.l.b16 %v255
        %v265 = vunpack.c.l.b16 %v257
        %v266 = vpack.c.b16 %v264, %v263
        %v267 = vpack.c.b16 %v265, %v265
        %vm268 = vsmask.f32 7424
        %v270 = vshrl.u32 %v266, 16
        %v272 = vshll.u32 %v266, 16
        %v274 = vrot.slane %v272, 1
        %v275 = vor.u32 %v270, %v274
        %v277 = vshll.u32 %v267, 16
        %v279 = vrot.slane %v277, 1
        %v280 = vsel %vm268, %v275, %v279
        %vm281 = vcmask 31744
        %v283 = vsel %vm281, %v280, 0
        %vm285 = vcmask 1041408
        %v287 = vsel %vm285, %v259, 0
        %289 = vmatprep.subr.bf16.mxu0 0
        %290 = vmatpush1.bf16.msra.mxu0 %v287
        %291 = vmatprep.subr.bf16.mxu0 0
        %292 = vmatpush1.bf16.msra.mxu0 0
        %293 = vmatprep.subr.bf16.mxu0 0
        %294 = vmatpush1.bf16.msra.mxu0 0
        %295 = vmatprep.subr.bf16.mxu0 0
        %296 = vmatpush1.bf16.msra.mxu0 0
        %297 = vmatprep.subr.bf16.mxu0 0
        %298 = vmatpush1.bf16.msra.mxu0 0
        %299 = vmatprep.subr.bf16.mxu0 0
        %300 = vmatpush1.bf16.msra.mxu0 0
        %301 = vmatprep.subr.bf16.mxu0 0
        %302 = vmatpush1.bf16.msra.mxu0 0
        %303 = vmatprep.subr.bf16.mxu0 0
        %304 = vmatpush1.bf16.msra.mxu0 0
        %305 = vmatprep.subr.bf16.mxu0 0
        %306 = vmatpush1.bf16.msra.mxu0 0
        %307 = vmatprep.subr.bf16.mxu0 0
        %308 = vmatpush1.bf16.msra.mxu0 0
        %309 = vmatprep.subr.bf16.mxu0 0
        %310 = vmatpush1.bf16.msra.mxu0 0
        %311 = vmatprep.subr.bf16.mxu0 0
        %312 = vmatpush1.bf16.msra.mxu0 0
        %313 = vmatprep.subr.bf16.mxu0 0
        %314 = vmatpush1.bf16.msra.mxu0 0
        %315 = vmatprep.subr.bf16.mxu0 0
        %316 = vmatpush1.bf16.msra.mxu0 0
        %317 = vmatprep.subr.bf16.mxu0 0
        %318 = vmatpush1.bf16.msra.mxu0 0
        %319 = vmatprep.subr.bf16.mxu0 0
        %320 = vmatpush1.bf16.msra.mxu0 0
        %321 = vmatprep.mubr.bf16.mxu0 0
        %322 = vmatmul.mubr.bf16.gmra.mrb[0].mxu0 %v283
        %v323 = vpop.f32.mrb[0].mxu0
        %v324 = vadd.f32 0.0, %v323
        %v325 = vpop.f32.mrb[0].mxu0
        %v326 = vpop.f32.mrb[0].mxu0
        %v327 = vadd.f32 0.0, %v326
        %v328 = vpop.f32.mrb[0].mxu0
        %329 = vdwg.mxu0
        %v330 = vsel %vm281, %v266, 0
        %v333 = vsel %vm285, %v256, 0
        %335 = vmatprep.subr.bf16.mxu0 0
        %336 = vmatpush1.bf16.msra.mxu0 %v333
        %337 = vmatprep.subr.bf16.mxu0 0
        %338 = vmatpush1.bf16.msra.mxu0 0
        %339 = vmatprep.subr.bf16.mxu0 0
        %340 = vmatpush1.bf16.msra.mxu0 0
        %341 = vmatprep.subr.bf16.mxu0 0
        %342 = vmatpush1.bf16.msra.mxu0 0
        %343 = vmatprep.subr.bf16.mxu0 0
        %344 = vmatpush1.bf16.msra.mxu0 0
        %345 = vmatprep.subr.bf16.mxu0 0
        %346 = vmatpush1.bf16.msra.mxu0 0
        %347 = vmatprep.subr.bf16.mxu0 0
        %348 = vmatpush1.bf16.msra.mxu0 0
        %349 = vmatprep.subr.bf16.mxu0 0
        %350 = vmatpush1.bf16.msra.mxu0 0
        %351 = vmatprep.subr.bf16.mxu0 0
        %352 = vmatpush1.bf16.msra.mxu0 0
        %353 = vmatprep.subr.bf16.mxu0 0
        %354 = vmatpush1.bf16.msra.mxu0 0
        %355 = vmatprep.subr.bf16.mxu0 0
        %356 = vmatpush1.bf16.msra.mxu0 0
        %357 = vmatprep.subr.bf16.mxu0 0
        %358 = vmatpush1.bf16.msra.mxu0 0
        %359 = vmatprep.subr.bf16.mxu0 0
        %360 = vmatpush1.bf16.msra.mxu0 0
        %361 = vmatprep.subr.bf16.mxu0 0
        %362 = vmatpush1.bf16.msra.mxu0 0
        %363 = vmatprep.subr.bf16.mxu0 0
        %364 = vmatpush1.bf16.msra.mxu0 0
        %365 = vmatprep.subr.bf16.mxu0 0
        %366 = vmatpush1.bf16.msra.mxu0 0
        %367 = vmatprep.mubr.bf16.mxu0 0
        %368 = vmatmul.mubr.bf16.gmra.mrb[0].mxu0 %v330
        %v369 = vpop.f32.mrb[0].mxu0
        %v370 = vadd.f32 %v324, %v369
        %v371 = vpop.f32.mrb[0].mxu0
        %v372 = vpop.f32.mrb[0].mxu0
        %v373 = vadd.f32 %v327, %v372
        %v374 = vpop.f32.mrb[0].mxu0
        %375 = vdwg.mxu0
        %v376 = vld [vmem:[%s253] sm:$0xe]
        %s377 = scalar_lea.vmem %s224, 4
        %v378 = vld [vmem:[%s377] sm:$0x3]
        %v380 = vunpack.c.l.b16 %v376
        %v381 = vpack.c.b16 %v264, %v380
        %vm382 = vcmask 1046528
        %v383 = vrot.slane %v381, 1
        %v384 = vrot.slane %v267, 1
        %v385 = vsel %vm382, %v383, %v384
        %v387 = vsel %vm281, %v385, 0
        %v390 = vsel %vm285, %v378, 0
        %392 = vmatprep.subr.bf16.mxu0 0
        %393 = vmatpush1.bf16.msra.mxu0 %v390
        %394 = vmatprep.subr.bf16.mxu0 0
        %395 = vmatpush1.bf16.msra.mxu0 0
        %396 = vmatprep.subr.bf16.mxu0 0
        %397 = vmatpush1.bf16.msra.mxu0 0
        %398 = vmatprep.subr.bf16.mxu0 0
        %399 = vmatpush1.bf16.msra.mxu0 0
        %400 = vmatprep.subr.bf16.mxu0 0
        %401 = vmatpush1.bf16.msra.mxu0 0
        %402 = vmatprep.subr.bf16.mxu0 0
        %403 = vmatpush1.bf16.msra.mxu0 0
        %404 = vmatprep.subr.bf16.mxu0 0
        %405 = vmatpush1.bf16.msra.mxu0 0
        %406 = vmatprep.subr.bf16.mxu0 0
        %407 = vmatpush1.bf16.msra.mxu0 0
        %408 = vmatprep.subr.bf16.mxu0 0
        %409 = vmatpush1.bf16.msra.mxu0 0
        %410 = vmatprep.subr.bf16.mxu0 0
        %411 = vmatpush1.bf16.msra.mxu0 0
        %412 = vmatprep.subr.bf16.mxu0 0
        %413 = vmatpush1.bf16.msra.mxu0 0
        %414 = vmatprep.subr.bf16.mxu0 0
        %415 = vmatpush1.bf16.msra.mxu0 0
        %416 = vmatprep.subr.bf16.mxu0 0
        %417 = vmatpush1.bf16.msra.mxu0 0
        %418 = vmatprep.subr.bf16.mxu0 0
        %419 = vmatpush1.bf16.msra.mxu0 0
        %420 = vmatprep.subr.bf16.mxu0 0
        %421 = vmatpush1.bf16.msra.mxu0 0
        %422 = vmatprep.subr.bf16.mxu0 0
        %423 = vmatpush1.bf16.msra.mxu0 0
        %424 = vmatprep.mubr.bf16.mxu0 0
        %425 = vmatmul.mubr.bf16.gmra.mrb[0].mxu0 %v387
        %v426 = vpop.f32.mrb[0].mxu0
        %v427 = vadd.f32 0.0, %v426
        %v428 = vpop.f32.mrb[0].mxu0
        %v429 = vpop.f32.mrb[0].mxu0
        %v430 = vadd.f32 0.0, %v429
        %v431 = vpop.f32.mrb[0].mxu0
        %432 = vdwg.mxu0
        %v433 = vadd.f32 %v370, %v427
        %v434 = vadd.f32 %v373, %v430
        %s435 = sadd.s32 %s250, 1
        %s436 = smul.u32 %s435, 3
        %s437 = smul.addr %s436, 4
        %s438 = scalar_lea.vmem %s220, %s437
        %v439 = vld [vmem:[%s438] sm:$0xf]
        %v440 = vld [vmem:[%s438 + $0x4] sm:$0xf]
        %s441 = scalar_lea.vmem %s224, 6
        %v442 = vld [vmem:[%s441] sm:$0x3]
        %v445 = vunpack.c.l.b16 %v439
        %v446 = vunpack.c.l.b16 %v440
        %v447 = vpack.c.b16 %v446, %v445
        %v449 = vsel %vm281, %v447, 0
        %v452 = vsel %vm285, %v442, 0
        %454 = vmatprep.subr.bf16.mxu0 0
        %455 = vmatpush1.bf16.msra.mxu0 %v452
        %456 = vmatprep.subr.bf16.mxu0 0
        %457 = vmatpush1.bf16.msra.mxu0 0
        %458 = vmatprep.subr.bf16.mxu0 0
        %459 = vmatpush1.bf16.msra.mxu0 0
        %460 = vmatprep.subr.bf16.mxu0 0
        %461 = vmatpush1.bf16.msra.mxu0 0
        %462 = vmatprep.subr.bf16.mxu0 0
        %463 = vmatpush1.bf16.msra.mxu0 0
        %464 = vmatprep.subr.bf16.mxu0 0
        %465 = vmatpush1.bf16.msra.mxu0 0
        %466 = vmatprep.subr.bf16.mxu0 0
        %467 = vmatpush1.bf16.msra.mxu0 0
        %468 = vmatprep.subr.bf16.mxu0 0
        %469 = vmatpush1.bf16.msra.mxu0 0
        %470 = vmatprep.subr.bf16.mxu0 0
        %471 = vmatpush1.bf16.msra.mxu0 0
        %472 = vmatprep.subr.bf16.mxu0 0
        %473 = vmatpush1.bf16.msra.mxu0 0
        %474 = vmatprep.subr.bf16.mxu0 0
        %475 = vmatpush1.bf16.msra.mxu0 0
        %476 = vmatprep.subr.bf16.mxu0 0
        %477 = vmatpush1.bf16.msra.mxu0 0
        %478 = vmatprep.subr.bf16.mxu0 0
        %479 = vmatpush1.bf16.msra.mxu0 0
        %480 = vmatprep.subr.bf16.mxu0 0
        %481 = vmatpush1.bf16.msra.mxu0 0
        %482 = vmatprep.subr.bf16.mxu0 0
        %483 = vmatpush1.bf16.msra.mxu0 0
        %484 = vmatprep.subr.bf16.mxu0 0
        %485 = vmatpush1.bf16.msra.mxu0 0
        %486 = vmatprep.mubr.bf16.mxu0 0
        %487 = vmatmul.mubr.bf16.gmra.mrb[0].mxu0 %v449
        %v488 = vpop.f32.mrb[0].mxu0
        %v489 = vadd.f32 0.0, %v488
        %v490 = vpop.f32.mrb[0].mxu0
        %v491 = vpop.f32.mrb[0].mxu0
        %v492 = vadd.f32 0.0, %v491
        %v493 = vpop.f32.mrb[0].mxu0
        %494 = vdwg.mxu0
        %v495 = vadd.f32 %v433, %v489
        %v496 = vadd.f32 %v434, %v492
        %v497 = vld [vmem:[%s438] sm:$0xf]
        %v498 = vld [vmem:[%s438 + $0x4] sm:$0xf]
        %v499 = vld [vmem:[%s438 + $0x8] sm:$0x1]
        %s500 = scalar_lea.vmem %s224, 8
        %v501 = vld [vmem:[%s500] sm:$0x3]
        %v505 = vunpack.c.l.b16 %v497
        %v506 = vunpack.c.l.b16 %v498
        %v507 = vunpack.c.l.b16 %v499
        %v508 = vpack.c.b16 %v506, %v505
        %v509 = vpack.c.b16 %v507, %v507
        %v511 = vshrl.u32 %v508, 16
        %v513 = vshll.u32 %v508, 16
        %v515 = vrot.slane %v513, 1
        %v516 = vor.u32 %v511, %v515
        %v518 = vshll.u32 %v509, 16
        %v520 = vrot.slane %v518, 1
        %v521 = vsel %vm268, %v516, %v520
        %v523 = vsel %vm281, %v521, 0
        %v526 = vsel %vm285, %v501, 0
        %528 = vmatprep.subr.bf16.mxu0 0
        %529 = vmatpush1.bf16.msra.mxu0 %v526
        %530 = vmatprep.subr.bf16.mxu0 0
        %531 = vmatpush1.bf16.msra.mxu0 0
        %532 = vmatprep.subr.bf16.mxu0 0
        %533 = vmatpush1.bf16.msra.mxu0 0
        %534 = vmatprep.subr.bf16.mxu0 0
        %535 = vmatpush1.bf16.msra.mxu0 0
        %536 = vmatprep.subr.bf16.mxu0 0
        %537 = vmatpush1.bf16.msra.mxu0 0
        %538 = vmatprep.subr.bf16.mxu0 0
        %539 = vmatpush1.bf16.msra.mxu0 0
        %540 = vmatprep.subr.bf16.mxu0 0
        %541 = vmatpush1.bf16.msra.mxu0 0
        %542 = vmatprep.subr.bf16.mxu0 0
        %543 = vmatpush1.bf16.msra.mxu0 0
        %544 = vmatprep.subr.bf16.mxu0 0
        %545 = vmatpush1.bf16.msra.mxu0 0
        %546 = vmatprep.subr.bf16.mxu0 0
        %547 = vmatpush1.bf16.msra.mxu0 0
        %548 = vmatprep.subr.bf16.mxu0 0
        %549 = vmatpush1.bf16.msra.mxu0 0
        %550 = vmatprep.subr.bf16.mxu0 0
        %551 = vmatpush1.bf16.msra.mxu0 0
        %552 = vmatprep.subr.bf16.mxu0 0
        %553 = vmatpush1.bf16.msra.mxu0 0
        %554 = vmatprep.subr.bf16.mxu0 0
        %555 = vmatpush1.bf16.msra.mxu0 0
        %556 = vmatprep.subr.bf16.mxu0 0
        %557 = vmatpush1.bf16.msra.mxu0 0
        %558 = vmatprep.subr.bf16.mxu0 0
        %559 = vmatpush1.bf16.msra.mxu0 0
        %560 = vmatprep.mubr.bf16.mxu0 0
        %561 = vmatmul.mubr.bf16.gmra.mrb[0].mxu0 %v523
        %v562 = vpop.f32.mrb[0].mxu0
        %v563 = vadd.f32 0.0, %v562
        %v564 = vpop.f32.mrb[0].mxu0
        %v565 = vpop.f32.mrb[0].mxu0
        %v566 = vadd.f32 0.0, %v565
        %v567 = vpop.f32.mrb[0].mxu0
        %568 = vdwg.mxu0
        %v569 = vadd.f32 %v495, %v563
        %v570 = vadd.f32 %v496, %v566
        %v571 = vld [vmem:[%s438] sm:$0xe]
        %s572 = scalar_lea.vmem %s224, 10
        %v573 = vld [vmem:[%s572] sm:$0x3]
        %v575 = vunpack.c.l.b16 %v571
        %v576 = vpack.c.b16 %v506, %v575
        %v577 = vrot.slane %v576, 1
        %v578 = vrot.slane %v509, 1
        %v579 = vsel %vm382, %v577, %v578
        %v581 = vsel %vm281, %v579, 0
        %v584 = vsel %vm285, %v573, 0
        %586 = vmatprep.subr.bf16.mxu0 0
        %587 = vmatpush1.bf16.msra.mxu0 %v584
        %588 = vmatprep.subr.bf16.mxu0 0
        %589 = vmatpush1.bf16.msra.mxu0 0
        %590 = vmatprep.subr.bf16.mxu0 0
        %591 = vmatpush1.bf16.msra.mxu0 0
        %592 = vmatprep.subr.bf16.mxu0 0
        %593 = vmatpush1.bf16.msra.mxu0 0
        %594 = vmatprep.subr.bf16.mxu0 0
        %595 = vmatpush1.bf16.msra.mxu0 0
        %596 = vmatprep.subr.bf16.mxu0 0
        %597 = vmatpush1.bf16.msra.mxu0 0
        %598 = vmatprep.subr.bf16.mxu0 0
        %599 = vmatpush1.bf16.msra.mxu0 0
        %600 = vmatprep.subr.bf16.mxu0 0
        %601 = vmatpush1.bf16.msra.mxu0 0
        %602 = vmatprep.subr.bf16.mxu0 0
        %603 = vmatpush1.bf16.msra.mxu0 0
        %604 = vmatprep.subr.bf16.mxu0 0
        %605 = vmatpush1.bf16.msra.mxu0 0
        %606 = vmatprep.subr.bf16.mxu0 0
        %607 = vmatpush1.bf16.msra.mxu0 0
        %608 = vmatprep.subr.bf16.mxu0 0
        %609 = vmatpush1.bf16.msra.mxu0 0
        %610 = vmatprep.subr.bf16.mxu0 0
        %611 = vmatpush1.bf16.msra.mxu0 0
        %612 = vmatprep.subr.bf16.mxu0 0
        %613 = vmatpush1.bf16.msra.mxu0 0
        %614 = vmatprep.subr.bf16.mxu0 0
        %615 = vmatpush1.bf16.msra.mxu0 0
        %616 = vmatprep.subr.bf16.mxu0 0
        %617 = vmatpush1.bf16.msra.mxu0 0
        %618 = vmatprep.mubr.bf16.mxu0 0
        %619 = vmatmul.mubr.bf16.gmra.mrb[0].mxu0 %v581
        %v620 = vpop.f32.mrb[0].mxu0
        %v621 = vadd.f32 0.0, %v620
        %v622 = vpop.f32.mrb[0].mxu0
        %v623 = vpop.f32.mrb[0].mxu0
        %v624 = vadd.f32 0.0, %v623
        %v625 = vpop.f32.mrb[0].mxu0
        %626 = vdwg.mxu0
        %v627 = vadd.f32 %v569, %v621
        %v628 = vadd.f32 %v570, %v624
        %s629 = sadd.s32 %s250, 2
        %s630 = smul.u32 %s629, 3
        %s631 = smul.addr %s630, 4
        %s632 = scalar_lea.vmem %s220, %s631
        %v633 = vld [vmem:[%s632] sm:$0xf]
        %v634 = vld [vmem:[%s632 + $0x4] sm:$0xf]
        %s635 = scalar_lea.vmem %s224, 12
        %v636 = vld [vmem:[%s635] sm:$0x3]
        %v639 = vunpack.c.l.b16 %v633
        %v640 = vunpack.c.l.b16 %v634
        %v641 = vpack.c.b16 %v640, %v639
        %v643 = vsel %vm281, %v641, 0
        %v646 = vsel %vm285, %v636, 0
        %648 = vmatprep.subr.bf16.mxu0 0
        %649 = vmatpush1.bf16.msra.mxu0 %v646
        %650 = vmatprep.subr.bf16.mxu0 0
        %651 = vmatpush1.bf16.msra.mxu0 0
        %652 = vmatprep.subr.bf16.mxu0 0
        %653 = vmatpush1.bf16.msra.mxu0 0
        %654 = vmatprep.subr.bf16.mxu0 0
        %655 = vmatpush1.bf16.msra.mxu0 0
        %656 = vmatprep.subr.bf16.mxu0 0
        %657 = vmatpush1.bf16.msra.mxu0 0
        %658 = vmatprep.subr.bf16.mxu0 0
        %659 = vmatpush1.bf16.msra.mxu0 0
        %660 = vmatprep.subr.bf16.mxu0 0
        %661 = vmatpush1.bf16.msra.mxu0 0
        %662 = vmatprep.subr.bf16.mxu0 0
        %663 = vmatpush1.bf16.msra.mxu0 0
        %664 = vmatprep.subr.bf16.mxu0 0
        %665 = vmatpush1.bf16.msra.mxu0 0
        %666 = vmatprep.subr.bf16.mxu0 0
        %667 = vmatpush1.bf16.msra.mxu0 0
        %668 = vmatprep.subr.bf16.mxu0 0
        %669 = vmatpush1.bf16.msra.mxu0 0
        %670 = vmatprep.subr.bf16.mxu0 0
        %671 = vmatpush1.bf16.msra.mxu0 0
        %672 = vmatprep.subr.bf16.mxu0 0
        %673 = vmatpush1.bf16.msra.mxu0 0
        %674 = vmatprep.subr.bf16.mxu0 0
        %675 = vmatpush1.bf16.msra.mxu0 0
        %676 = vmatprep.subr.bf16.mxu0 0
        %677 = vmatpush1.bf16.msra.mxu0 0
        %678 = vmatprep.subr.bf16.mxu0 0
        %679 = vmatpush1.bf16.msra.mxu0 0
        %680 = vmatprep.mubr.bf16.mxu0 0
        %681 = vmatmul.mubr.bf16.gmra.mrb[0].mxu0 %v643
        %v682 = vpop.f32.mrb[0].mxu0
        %v683 = vadd.f32 0.0, %v682
        %v684 = vpop.f32.mrb[0].mxu0
        %v685 = vpop.f32.mrb[0].mxu0
        %v686 = vadd.f32 0.0, %v685
        %v687 = vpop.f32.mrb[0].mxu0
        %688 = vdwg.mxu0
        %v689 = vadd.f32 %v627, %v683
        %v690 = vadd.f32 %v628, %v686
        %v691 = vld [vmem:[%s632] sm:$0xf]
        %v692 = vld [vmem:[%s632 + $0x4] sm:$0xf]
        %v693 = vld [vmem:[%s632 + $0x8] sm:$0x1]
        %s694 = scalar_lea.vmem %s224, 14
        %v695 = vld [vmem:[%s694] sm:$0x3]
        %v699 = vunpack.c.l.b16 %v691
        %v700 = vunpack.c.l.b16 %v692
        %v701 = vunpack.c.l.b16 %v693
        %v702 = vpack.c.b16 %v700, %v699
        %v703 = vpack.c.b16 %v701, %v701
        %v705 = vshrl.u32 %v702, 16
        %v707 = vshll.u32 %v702, 16
        %v709 = vrot.slane %v707, 1
        %v710 = vor.u32 %v705, %v709
        %v712 = vshll.u32 %v703, 16
        %v714 = vrot.slane %v712, 1
        %v715 = vsel %vm268, %v710, %v714
        %v717 = vsel %vm281, %v715, 0
        %v720 = vsel %vm285, %v695, 0
        %722 = vmatprep.subr.bf16.mxu0 0
        %723 = vmatpush1.bf16.msra.mxu0 %v720
        %724 = vmatprep.subr.bf16.mxu0 0
        %725 = vmatpush1.bf16.msra.mxu0 0
        %726 = vmatprep.subr.bf16.mxu0 0
        %727 = vmatpush1.bf16.msra.mxu0 0
        %728 = vmatprep.subr.bf16.mxu0 0
        %729 = vmatpush1.bf16.msra.mxu0 0
        %730 = vmatprep.subr.bf16.mxu0 0
        %731 = vmatpush1.bf16.msra.mxu0 0
        %732 = vmatprep.subr.bf16.mxu0 0
        %733 = vmatpush1.bf16.msra.mxu0 0
        %734 = vmatprep.subr.bf16.mxu0 0
        %735 = vmatpush1.bf16.msra.mxu0 0
        %736 = vmatprep.subr.bf16.mxu0 0
        %737 = vmatpush1.bf16.msra.mxu0 0
        %738 = vmatprep.subr.bf16.mxu0 0
        %739 = vmatpush1.bf16.msra.mxu0 0
        %740 = vmatprep.subr.bf16.mxu0 0
        %741 = vmatpush1.bf16.msra.mxu0 0
        %742 = vmatprep.subr.bf16.mxu0 0
        %743 = vmatpush1.bf16.msra.mxu0 0
        %744 = vmatprep.subr.bf16.mxu0 0
        %745 = vmatpush1.bf16.msra.mxu0 0
        %746 = vmatprep.subr.bf16.mxu0 0
        %747 = vmatpush1.bf16.msra.mxu0 0
        %748 = vmatprep.subr.bf16.mxu0 0
        %749 = vmatpush1.bf16.msra.mxu0 0
        %750 = vmatprep.subr.bf16.mxu0 0
        %751 = vmatpush1.bf16.msra.mxu0 0
        %752 = vmatprep.subr.bf16.mxu0 0
        %753 = vmatpush1.bf16.msra.mxu0 0
        %754 = vmatprep.mubr.bf16.mxu0 0
        %755 = vmatmul.mubr.bf16.gmra.mrb[0].mxu0 %v717
        %v756 = vpop.f32.mrb[0].mxu0
        %v757 = vadd.f32 0.0, %v756
        %v758 = vpop.f32.mrb[0].mxu0
        %v759 = vpop.f32.mrb[0].mxu0
        %v760 = vadd.f32 0.0, %v759
        %v761 = vpop.f32.mrb[0].mxu0
        %762 = vdwg.mxu0
        %v763 = vadd.f32 %v689, %v757
        %v764 = vadd.f32 %v690, %v760
        %v765 = vld [vmem:[%s632] sm:$0xe]
        %s766 = scalar_lea.vmem %s224, 16
        %v767 = vld [vmem:[%s766] sm:$0x3]
        %v769 = vunpack.c.l.b16 %v765
        %v770 = vpack.c.b16 %v700, %v769
        %v771 = vrot.slane %v770, 1
        %v772 = vrot.slane %v703, 1
        %v773 = vsel %vm382, %v771, %v772
        %v775 = vsel %vm281, %v773, 0
        %v778 = vsel %vm285, %v767, 0
        %780 = vmatprep.subr.bf16.mxu0 0
        %781 = vmatpush1.bf16.msra.mxu0 %v778
        %782 = vmatprep.subr.bf16.mxu0 0
        %783 = vmatpush1.bf16.msra.mxu0 0
        %784 = vmatprep.subr.bf16.mxu0 0
        %785 = vmatpush1.bf16.msra.mxu0 0
        %786 = vmatprep.subr.bf16.mxu0 0
        %787 = vmatpush1.bf16.msra.mxu0 0
        %788 = vmatprep.subr.bf16.mxu0 0
        %789 = vmatpush1.bf16.msra.mxu0 0
        %790 = vmatprep.subr.bf16.mxu0 0
        %791 = vmatpush1.bf16.msra.mxu0 0
        %792 = vmatprep.subr.bf16.mxu0 0
        %793 = vmatpush1.bf16.msra.mxu0 0
        %794 = vmatprep.subr.bf16.mxu0 0
        %795 = vmatpush1.bf16.msra.mxu0 0
        %796 = vmatprep.subr.bf16.mxu0 0
        %797 = vmatpush1.bf16.msra.mxu0 0
        %798 = vmatprep.subr.bf16.mxu0 0
        %799 = vmatpush1.bf16.msra.mxu0 0
        %800 = vmatprep.subr.bf16.mxu0 0
        %801 = vmatpush1.bf16.msra.mxu0 0
        %802 = vmatprep.subr.bf16.mxu0 0
        %803 = vmatpush1.bf16.msra.mxu0 0
        %804 = vmatprep.subr.bf16.mxu0 0
        %805 = vmatpush1.bf16.msra.mxu0 0
        %806 = vmatprep.subr.bf16.mxu0 0
        %807 = vmatpush1.bf16.msra.mxu0 0
        %808 = vmatprep.subr.bf16.mxu0 0
        %809 = vmatpush1.bf16.msra.mxu0 0
        %810 = vmatprep.subr.bf16.mxu0 0
        %811 = vmatpush1.bf16.msra.mxu0 0
        %812 = vmatprep.mubr.bf16.mxu0 0
        %813 = vmatmul.mubr.bf16.gmra.mrb[0].mxu0 %v775
        %v814 = vpop.f32.mrb[0].mxu0
        %v815 = vadd.f32 0.0, %v814
        %v816 = vpop.f32.mrb[0].mxu0
        %v817 = vpop.f32.mrb[0].mxu0
        %v818 = vadd.f32 0.0, %v817
        %v819 = vpop.f32.mrb[0].mxu0
        %820 = vdwg.mxu0
        %v821 = vadd.f32 %v763, %v815
        %v822 = vadd.f32 %v764, %v818
        %v823 = vld [vmem:[%s227] sm:$0x1]
        %v825 = vlaneseq
        %v826 = vshrl.u32 %v825, 7
        %v827 = vsub.s32 0, %v826
        %v828 = vrot.slane %v823, %v827
        %v830 = vadd.f32 %v821, %v828
        %v831 = vadd.f32 %v822, %v828
        %v832 = vxor.u32 %v830, 2147483648
        %v833 = vxor.u32 %v831, 2147483648
        %v834 = vmul.f32 %v832, 1.442695
        %v835 = vpow.pop %v834
        %v836 = vmul.f32 %v833, 1.442695
        %v837 = vpow.pop %v836
        %v838 = vadd.f32 %v835, 1.0
        %v839 = vadd.f32 %v837, 1.0
        %v840 = vrcp.pop %v838
        %v841 = vmul.f32 1.0, %v840
        %v842 = vrcp.pop %v839
        %v843 = vmul.f32 1.0, %v842
        %v844 = vmul.f32 %v830, %v841
        %v845 = vmul.f32 %v831, %v843
        %s846 = smul.u32 %s245, 16
        %s847 = scalar_lea.vmem %s240, %s846
        %848 = vst [vmem:[%s847] sm:$0xff] %v844
        %849 = vst [vmem:[%s847 + $0x8] sm:$0xff] %v845
      $region37: #{conv_bn_silu.1} parent=31 // loop_footer
        %s249 = sadd.s32 1, %s245
      $region38: #{conv_bn_silu.1} parent=31 // loop_footer_branch
        %244 = sbr.rel target = $region34
      $region39: #{conv_bn_silu.1} parent=31 // loop_exit
        _
      %s850 = smul.u32 8, %s21
      %p851 = scmp.lt.s32.totalorder %s19, 1
      %s852 = scalar_select %p851, %s19, 1
      %p853 = scmp.lt.s32.totalorder %s850, 15
      %s854 = scalar_select %p853, %s850, 15
      %p855 = scmp.lt.s32.totalorder %s20, 0
      %s856 = scalar_select %p855, %s20, 0
      %s857 = smul.addr %s854, 2
      %s858 = sadd.s32 %s856, %s857
      %s859 = smul.addr %s852, 32
      %s860 = sadd.s32 %s858, %s859
      %s861 = smul.addr %s860, 8
      %s862 = scalar_lea.vmem %s3, %s861
      // Predicated region
      $region40: #{conv_bn_silu.1} parent=31 // pred_check
        %p863 = pneg %p133
      $region41: #{conv_bn_silu.1} parent=31 // pred_check_branch
        %865 = sbr.rel (%p863) target = $region43
      $region42: #{conv_bn_silu.1} parent=31 // pred_region
        %s866 = smul.u32 8, %s21
      $region43: #{conv_bn_silu.1} parent=31 // pred_fallthru
        _
    $region32: #{conv_bn_silu.1} parent=5 // pred_fallthru
      _
    %p867 = scmp.le.s32.totalorder 2, %s9
    // Predicated region
    $region44: #{conv_bn_silu.1} parent=5 // pred_check
      %p868 = pneg %p867
    $region45: #{conv_bn_silu.1} parent=5 // pred_check_branch
      %870 = sbr.rel (%p868) target = $region47
    $region46: #{conv_bn_silu.1} parent=5 // pred_region
      %s871 = ssub.s32 %s9, 2
      // Predicated region
      $region48: #{conv_bn_silu.1} parent=46 // pred_check
        %p872 = pneg %p139
      $region49: #{conv_bn_silu.1} parent=46 // pred_check_branch
        %874 = sbr.rel (%p872) target = $region51
      $region50: #{conv_bn_silu.1} parent=46 // pred_region
        %s875 = smul.u32 8, %s24
        %p876 = scmp.lt.s32.totalorder %s22, 1
        %s877 = scalar_select %p876, %s22, 1
        %p878 = scmp.lt.s32.totalorder %s875, 15
        %s879 = scalar_select %p878, %s875, 15
        %p880 = scmp.lt.s32.totalorder %s23, 0
        %s881 = scalar_select %p880, %s23, 0
        %s882 = smul.addr %s879, 2
        %s883 = sadd.s32 %s881, %s882
        %s884 = smul.addr %s877, 32
        %s885 = sadd.s32 %s883, %s884
        %s886 = smul.addr %s885, 8
        %s887 = scalar_lea.vmem %s3, %s886
      $region51: #{conv_bn_silu.1} parent=46 // pred_fallthru
        _
    $region47: #{conv_bn_silu.1} parent=5 // pred_fallthru
      _
  $region6: #{conv_bn_silu.1} parent=0 // loop_footer
    %s13 = sadd.s32 1, %s9
  $region7: #{conv_bn_silu.1} parent=0 // loop_footer_branch
    %8 = sbr.rel target = $region3
  $region8: #{conv_bn_silu.1} parent=0 // loop_exit
    _

</llo_original>
